<compile_context>
chip_gen: v5e
topology: v5e:2x2
jax: 0.10.0
libtpu: 0.0.40
codegen_flags: <defaults>
</compile_context>

<pallas_src>
import math

import jax
import jax.numpy as jnp
import numpy as np
from jax.experimental import pallas as pl
from jax.experimental.pallas import tpu as pltpu

# ---------------- model dims (small, consistent with the module) ----------------
ALPHABET_LEN = 16      # GRU input size / final output size
GRU_HIDDEN_DIM = 32    # GRU hidden size
BATCH = 4
LANES = 128            # lane width of the packed weight / bias / output slabs

assert 4 * GRU_HIDDEN_DIM <= LANES, "GRU gate packing needs 4*H <= 128"
assert ALPHABET_LEN + GRU_HIDDEN_DIM <= LANES, "output packing needs A + H <= 128"
# stacked weight-slab rows: gi(A) + gh(H) + W1(H) + W2(H) + W3(A)
W_ROWS = 2 * ALPHABET_LEN + 3 * GRU_HIDDEN_DIM   # = 128 for A=16, H=32


# ---------------------------- Pallas kernel body --------------------------------
def decode_next_kernel(x_ref, h_ref, w_ref, b_ref, out_ref):
    A = ALPHABET_LEN
    H = GRU_HIDDEN_DIM

    x = x_ref[...]          # (B, A)
    h = h_ref[...]          # (B, H)

    # Row offsets inside the stacked weight slab.
    GI0 = 0                 # (A, 128) fused input-gate weights
    GH0 = A                 # (H, 128) fused hidden-gate weights
    W10 = A + H             # (H, H)  MLP layer 1
    W20 = W10 + H           # (H, A)  MLP layer 2
    W30 = W20 + H           # (A, A)  MLP layer 3

    # ---- GRU cell: 2 fused lane-dense MXU matmuls + one bias row ----
    gx = jnp.dot(x, w_ref[GI0:GI0 + A, :], preferred_element_type=jnp.float32)   # (B, 128)
    gh = jnp.dot(h, w_ref[GH0:GH0 + H, :], preferred_element_type=jnp.float32)   # (B, 128)
    g = gx + gh + b_ref[0:1, :]
    # column layout of g: [0:H]=r pre-act, [H:2H]=z pre-act, [2H:3H]=i_n+b_in, [3H:4H]=h_n+b_hn
    rz = jax.nn.sigmoid(g[:, 0:2 * H])
    r = rz[:, 0:H]
    z = rz[:, H:2 * H]
    n = jnp.tanh(g[:, 2 * H:3 * H] + r * g[:, 3 * H:4 * H])
    h_new = (1.0 - z) * n + z * h

    # ---- dense decoder: Linear -> Tanh -> Linear -> Tanh -> Linear ----
    t1 = jnp.tanh(
        jnp.dot(h_new, w_ref[W10:W10 + H, 0:H], preferred_element_type=jnp.float32)
        + b_ref[1:2, 0:H])
    t2 = jnp.tanh(
        jnp.dot(t1, w_ref[W20:W20 + H, 0:A], preferred_element_type=jnp.float32)
        + b_ref[2:3, 0:A])
    pred = (
        jnp.dot(t2, w_ref[W30:W30 + A, 0:A], preferred_element_type=jnp.float32)
        + b_ref[3:4, 0:A])

    # ---- single lane-padded output slab: [pred | h_new | 0] ----
    out_ref[...] = jnp.zeros_like(out_ref)
    out_ref[:, 0:A] = pred.astype(out_ref.dtype)
    out_ref[:, A:A + H] = h_new.astype(out_ref.dtype)


# ------------------------------- wrapper ----------------------------------------
def decode_next(inp, hidden, params):
    """inp: (B, 1, A) f32, hidden: (1, B, H) f32 -> (prediction (B, A), hidden (1, B, H))."""
    B = inp.shape[0]
    A, H = ALPHABET_LEN, GRU_HIDDEN_DIM

    x = inp.reshape(B, A)          # squeeze(1) equivalent (seq len == 1)
    h = hidden.reshape(B, H)

    flops = 2 * B * (A * LANES + H * LANES + H * H + H * A + A * A)
    transcendentals = B * (2 * H + H + H + A)     # sigmoid(rz) + tanh(n) + tanh(t1) + tanh(t2)
    bytes_accessed = 4 * (B * A + B * H + W_ROWS * LANES + 4 * LANES + B * LANES)

    vmem = pl.BlockSpec(memory_space=pltpu.MemorySpace.VMEM)
    out = pl.pallas_call(
        decode_next_kernel,
        out_shape=jax.ShapeDtypeStruct((B, LANES), jnp.float32),
        in_specs=[vmem, vmem, vmem, vmem],
        out_specs=vmem,
        cost_estimate=pl.CostEstimate(
            flops=flops, transcendentals=transcendentals, bytes_accessed=bytes_accessed),
    )(x, h, params["w_slab"], params["b_slab"])

    pred = out[:, 0:A]
    h_out = out[:, A:A + H].reshape(1, B, H)
    return pred, h_out


# -------------------- deterministic parameter initialization --------------------
def init_params(key):
    A, H = ALPHABET_LEN, GRU_HIDDEN_DIM
    ks = jax.random.split(key, 10)
    s_gru = 1.0 / math.sqrt(H)

    def u(k, shape, scale):
        return jax.random.uniform(k, shape, jnp.float32, -scale, scale)

    # PyTorch GRU params: weight_ih (3H, A), weight_hh (3H, H), biases (3H,), gate order r,z,n.
    w_ih = u(ks[0], (3 * H, A), s_gru)
    w_hh = u(ks[1], (3 * H, H), s_gru)
    b_ih = u(ks[2], (3 * H,), s_gru)
    b_hh = u(ks[3], (3 * H,), s_gru)

    # Dense decoder (PyTorch Linear: W (out, in), b (out,)).
    w1 = u(ks[4], (H, H), 1.0 / math.sqrt(H)); b1 = u(ks[5], (H,), 1.0 / math.sqrt(H))
    w2 = u(ks[6], (A, H), 1.0 / math.sqrt(H)); b2 = u(ks[7], (A,), 1.0 / math.sqrt(H))
    w3 = u(ks[8], (A, A), 1.0 / math.sqrt(A)); b3 = u(ks[9], (A,), 1.0 / math.sqrt(A))

    torch_params = dict(w_ih=w_ih, w_hh=w_hh, b_ih=b_ih, b_hh=b_hh,
                        w1=w1, b1=b1, w2=w2, b2=b2, w3=w3, b3=b3)

    # Split GRU weights (gate order r, z, n) and transpose to (in, out).
    wir, wiz, win = w_ih[0:H].T, w_ih[H:2 * H].T, w_ih[2 * H:].T        # (A, H)
    whr, whz, whn = w_hh[0:H].T, w_hh[H:2 * H].T, w_hh[2 * H:].T        # (H, H)

    # Fused GRU weight slabs; gx/gh column layout [r | z | n_input/0 | 0/n_hidden].
    gi_slab = jnp.zeros((A, LANES), jnp.float32)
    gi_slab = gi_slab.at[:, 0:H].set(wir).at[:, H:2 * H].set(wiz).at[:, 2 * H:3 * H].set(win)
    gh_slab = jnp.zeros((H, LANES), jnp.float32)
    gh_slab = gh_slab.at[:, 0:H].set(whr).at[:, H:2 * H].set(whz).at[:, 3 * H:4 * H].set(whn)

    # One (W_ROWS, 128) weight slab: [gi ; gh ; W1^T ; W2^T ; W3^T].
    w_slab = jnp.zeros((W_ROWS, LANES), jnp.float32)
    w_slab = w_slab.at[0:A, :].set(gi_slab)
    w_slab = w_slab.at[A:A + H, :].set(gh_slab)
    w_slab = w_slab.at[A + H:A + 2 * H, 0:H].set(w1.T)
    w_slab = w_slab.at[A + 2 * H:A + 3 * H, 0:A].set(w2.T)
    w_slab = w_slab.at[A + 3 * H:A + 3 * H + A, 0:A].set(w3.T)

    # One (4, 128) bias slab: row 0 = fused GRU biases, rows 1..3 = MLP biases.
    b_gru = jnp.zeros((LANES,), jnp.float32)
    b_gru = b_gru.at[0:H].set(b_ih[0:H] + b_hh[0:H])
    b_gru = b_gru.at[H:2 * H].set(b_ih[H:2 * H] + b_hh[H:2 * H])
    b_gru = b_gru.at[2 * H:3 * H].set(b_ih[2 * H:3 * H])
    b_gru = b_gru.at[3 * H:4 * H].set(b_hh[2 * H:3 * H])
    b_slab = jnp.zeros((4, LANES), jnp.float32)
    b_slab = b_slab.at[0, :].set(b_gru)
    b_slab = b_slab.at[1, 0:H].set(b1)
    b_slab = b_slab.at[2, 0:A].set(b2)
    b_slab = b_slab.at[3, 0:A].set(b3)

    kernel_params = dict(w_slab=w_slab, b_slab=b_slab)
    return torch_params, kernel_params


# ------------------------- pure-JAX reference (PyTorch semantics) ----------------
def decode_next_ref(inp, hidden, tp):
    H = GRU_HIDDEN_DIM
    x = inp[:, 0, :]
    h = hidden[0]
    gi = x @ tp["w_ih"].T + tp["b_ih"]
    gh = h @ tp["w_hh"].T + tp["b_hh"]
    i_r, i_z, i_n = gi[:, :H], gi[:, H:2 * H], gi[:, 2 * H:]
    h_r, h_z, h_n = gh[:, :H], gh[:, H:2 * H], gh[:, 2 * H:]
    r = jax.nn.sigmoid(i_r + h_r)
    z = jax.nn.sigmoid(i_z + h_z)
    n = jnp.tanh(i_n + r * h_n)
    h_new = (1.0 - z) * n + z * h
    t1 = jnp.tanh(h_new @ tp["w1"].T + tp["b1"])
    t2 = jnp.tanh(t1 @ tp["w2"].T + tp["b2"])
    pred = t2 @ tp["w3"].T + tp["b3"]
    return pred, h_new[None]


if __name__ == "__main__":
    key = jax.random.PRNGKey(0)
    k_p, k_x, k_h = jax.random.split(key, 3)

    torch_params, kernel_params = init_params(k_p)

    inp = jax.random.normal(k_x, (BATCH, 1, ALPHABET_LEN), jnp.float32)       # (B, seq=1, A)
    hidden = jax.random.normal(k_h, (1, BATCH, GRU_HIDDEN_DIM), jnp.float32)  # (num_layers=1, B, H)

    pred, h_out = decode_next(inp, hidden, kernel_params)
    pred = jax.block_until_ready(pred)
    h_out = jax.block_until_ready(h_out)

    pred_ref, h_ref = decode_next_ref(inp, hidden, torch_params)
    np.testing.assert_allclose(np.asarray(pred), np.asarray(pred_ref), rtol=1e-5, atol=1e-5)
    np.testing.assert_allclose(np.asarray(h_out), np.asarray(h_ref), rtol=1e-5, atol=1e-5)

    print("KERNEL_OK")
</pallas_src>

<mosaic_0001>
module attributes {stable_mosaic.version = 11 : i64} {
  func.func @decode_next_kernel(%arg0: memref<4x16xf32, #tpu.memory_space<vmem>>, %arg1: memref<4x32xf32, #tpu.memory_space<vmem>>, %arg2: memref<128x128xf32, #tpu.memory_space<vmem>>, %arg3: memref<4x128xf32, #tpu.memory_space<vmem>>, %arg4: memref<4x128xf32, #tpu.memory_space<vmem>>) attributes {dimension_semantics = [], scalar_prefetch = 0 : i64, scratch_operands = 0 : i64, tpu.core_type = #tpu.core_type<tc>} {
    %c0 = arith.constant 0 : index
    %c0_0 = arith.constant 0 : index
    %0 = vector.load %arg0[%c0, %c0_0] : memref<4x16xf32, #tpu.memory_space<vmem>>, vector<4x16xf32>
    %c0_1 = arith.constant 0 : index
    %c0_2 = arith.constant 0 : index
    %1 = vector.load %arg1[%c0_1, %c0_2] : memref<4x32xf32, #tpu.memory_space<vmem>>, vector<4x32xf32>
    %c0_3 = arith.constant 0 : index
    %c0_4 = arith.constant 0 : index
    %2 = vector.load %arg2[%c0_3, %c0_4] : memref<128x128xf32, #tpu.memory_space<vmem>>, vector<16x128xf32>
    %cst = arith.constant dense<0.000000e+00> : vector<4x128xf32>
    %3 = tpu.matmul %0, %2, %cst {dimension_numbers = #tpu.dot_dimension_numbers<[1], [0], [0], [1], [0, 0, 1, 1], [], []>} : vector<4x16xf32>, vector<16x128xf32>, vector<4x128xf32> -> vector<4x128xf32>
    %c16 = arith.constant 16 : index
    %c0_5 = arith.constant 0 : index
    %4 = vector.load %arg2[%c16, %c0_5] : memref<128x128xf32, #tpu.memory_space<vmem>>, vector<32x128xf32>
    %cst_6 = arith.constant dense<0.000000e+00> : vector<4x128xf32>
    %5 = tpu.matmul %1, %4, %cst_6 {dimension_numbers = #tpu.dot_dimension_numbers<[1], [0], [0], [1], [0, 0, 1, 1], [], []>} : vector<4x32xf32>, vector<32x128xf32>, vector<4x128xf32> -> vector<4x128xf32>
    %6 = arith.addf %3, %5 : vector<4x128xf32>
    %c0_7 = arith.constant 0 : index
    %c0_8 = arith.constant 0 : index
    %7 = vector.load %arg3[%c0_7, %c0_8] : memref<4x128xf32, #tpu.memory_space<vmem>>, vector<1x128xf32>
    %8 = vector.broadcast %7 : vector<1x128xf32> to vector<4x128xf32>
    %9 = arith.addf %6, %8 : vector<4x128xf32>
    %10 = vector.extract_strided_slice %9 {offsets = [0, 0], sizes = [4, 64], strides = [1, 1]} : vector<4x128xf32> to vector<4x64xf32>
    %11 = arith.negf %10 : vector<4x64xf32>
    %12 = math.exp %11 : vector<4x64xf32>
    %cst_9 = arith.constant 1.000000e+00 : f32
    %13 = vector.broadcast %cst_9 : f32 to vector<4x64xf32>
    %14 = arith.addf %13, %12 : vector<4x64xf32>
    %15 = arith.divf %13, %14 : vector<4x64xf32>
    %16 = vector.extract_strided_slice %15 {offsets = [0, 0], sizes = [4, 32], strides = [1, 1]} : vector<4x64xf32> to vector<4x32xf32>
    %17 = vector.extract_strided_slice %15 {offsets = [0, 32], sizes = [4, 32], strides = [1, 1]} : vector<4x64xf32> to vector<4x32xf32>
    %18 = vector.extract_strided_slice %9 {offsets = [0, 64], sizes = [4, 32], strides = [1, 1]} : vector<4x128xf32> to vector<4x32xf32>
    %19 = vector.extract_strided_slice %9 {offsets = [0, 96], sizes = [4, 32], strides = [1, 1]} : vector<4x128xf32> to vector<4x32xf32>
    %20 = arith.mulf %16, %19 : vector<4x32xf32>
    %21 = arith.addf %18, %20 : vector<4x32xf32>
    %22 = math.tanh %21 : vector<4x32xf32>
    %cst_10 = arith.constant 1.000000e+00 : f32
    %23 = vector.broadcast %cst_10 : f32 to vector<4x32xf32>
    %24 = arith.subf %23, %17 : vector<4x32xf32>
    %25 = arith.mulf %24, %22 : vector<4x32xf32>
    %26 = arith.mulf %17, %1 : vector<4x32xf32>
    %27 = arith.addf %25, %26 : vector<4x32xf32>
    %c48 = arith.constant 48 : index
    %c0_11 = arith.constant 0 : index
    %28 = vector.load %arg2[%c48, %c0_11] : memref<128x128xf32, #tpu.memory_space<vmem>>, vector<32x32xf32>
    %cst_12 = arith.constant dense<0.000000e+00> : vector<4x32xf32>
    %29 = tpu.matmul %27, %28, %cst_12 {dimension_numbers = #tpu.dot_dimension_numbers<[1], [0], [0], [1], [0, 0, 1, 1], [], []>} : vector<4x32xf32>, vector<32x32xf32>, vector<4x32xf32> -> vector<4x32xf32>
    %c1 = arith.constant 1 : index
    %c0_13 = arith.constant 0 : index
    %30 = vector.load %arg3[%c1, %c0_13] : memref<4x128xf32, #tpu.memory_space<vmem>>, vector<1x32xf32>
    %31 = vector.broadcast %30 : vector<1x32xf32> to vector<4x32xf32>
    %32 = arith.addf %29, %31 : vector<4x32xf32>
    %33 = math.tanh %32 : vector<4x32xf32>
    %c80 = arith.constant 80 : index
    %c0_14 = arith.constant 0 : index
    %34 = vector.load %arg2[%c80, %c0_14] : memref<128x128xf32, #tpu.memory_space<vmem>>, vector<32x16xf32>
    %cst_15 = arith.constant dense<0.000000e+00> : vector<4x16xf32>
    %35 = tpu.matmul %33, %34, %cst_15 {dimension_numbers = #tpu.dot_dimension_numbers<[1], [0], [0], [1], [0, 0, 1, 1], [], []>} : vector<4x32xf32>, vector<32x16xf32>, vector<4x16xf32> -> vector<4x16xf32>
    %c2 = arith.constant 2 : index
    %c0_16 = arith.constant 0 : index
    %36 = vector.load %arg3[%c2, %c0_16] : memref<4x128xf32, #tpu.memory_space<vmem>>, vector<1x16xf32>
    %37 = vector.broadcast %36 : vector<1x16xf32> to vector<4x16xf32>
    %38 = arith.addf %35, %37 : vector<4x16xf32>
    %39 = math.tanh %38 : vector<4x16xf32>
    %c112 = arith.constant 112 : index
    %c0_17 = arith.constant 0 : index
    %40 = vector.load %arg2[%c112, %c0_17] : memref<128x128xf32, #tpu.memory_space<vmem>>, vector<16x16xf32>
    %cst_18 = arith.constant dense<0.000000e+00> : vector<4x16xf32>
    %41 = tpu.matmul %39, %40, %cst_18 {dimension_numbers = #tpu.dot_dimension_numbers<[1], [0], [0], [1], [0, 0, 1, 1], [], []>} : vector<4x16xf32>, vector<16x16xf32>, vector<4x16xf32> -> vector<4x16xf32>
    %c3 = arith.constant 3 : index
    %c0_19 = arith.constant 0 : index
    %42 = vector.load %arg3[%c3, %c0_19] : memref<4x128xf32, #tpu.memory_space<vmem>>, vector<1x16xf32>
    %43 = vector.broadcast %42 : vector<1x16xf32> to vector<4x16xf32>
    %44 = arith.addf %41, %43 : vector<4x16xf32>
    %cst_20 = arith.constant 0.000000e+00 : f32
    %45 = vector.broadcast %cst_20 : f32 to vector<4x128xf32>
    %c0_21 = arith.constant 0 : index
    %c0_22 = arith.constant 0 : index
    %46 = vector.load %arg4[%c0_21, %c0_22] : memref<4x128xf32, #tpu.memory_space<vmem>>, vector<4x128xf32>
    tpu.vector_store %arg4[%c0_21, %c0_22], %45 {strides = array<i32>} : memref<4x128xf32, #tpu.memory_space<vmem>>, vector<4x128xf32>,
    %c0_23 = arith.constant 0 : index
    %c0_24 = arith.constant 0 : index
    %47 = vector.load %arg4[%c0_23, %c0_24] : memref<4x128xf32, #tpu.memory_space<vmem>>, vector<4x16xf32>
    tpu.vector_store %arg4[%c0_23, %c0_24], %44 {strides = array<i32>} : memref<4x128xf32, #tpu.memory_space<vmem>>, vector<4x16xf32>,
    %c0_25 = arith.constant 0 : index
    %c16_26 = arith.constant 16 : index
    %48 = vector.load %arg4[%c0_25, %c16_26] : memref<4x128xf32, #tpu.memory_space<vmem>>, vector<4x32xf32>
    tpu.vector_store %arg4[%c0_25, %c16_26], %27 {strides = array<i32>} : memref<4x128xf32, #tpu.memory_space<vmem>>, vector<4x32xf32>,
    return
  }
}

</mosaic_0001>

<llo_original>
// kernel: tpu_custom_call.1
$region0: #{tpu_custom_call.1}
  #allocation0 [shape = 'u32[]', space=smem, size = 0x4, offset = 0x4, fixed_abs, tag = 'smem constant byte address 0x4 - core index']
  #allocation1 [shape = 'u32[72,128]{1,0:T(1,128)}', space=vmem, size = 0x9000, scoped, tag = 'internal scratch']
  %s0 = inlined_call_operand.hbm [shape: f32[4,16], index: 0, kind: input, shape index: {}]
  %s1 = inlined_call_operand.hbm [shape: f32[4,32], index: 1, kind: input, shape index: {}]
  %s2 = inlined_call_operand.hbm [shape: f32[128,128], index: 2, kind: input, shape index: {}]
  %s3 = inlined_call_operand.hbm [shape: f32[4,128], index: 3, kind: input, shape index: {}]
  %s4 = inlined_call_operand.hbm [shape: f32[4,128], index: 4, kind: output, shape index: {}]
  %s5 = sld [smem:[#allocation0]]
  $region42: #{tpu_custom_call.1} parent=0
    _
  %s7 = ssub.s32 1, %s5
  %s8 = scalar_select 0, %s7, %s5
  $region1: #{tpu_custom_call.1} parent=0
    #allocation2 [shape = 'u8[2048]{0}', space=vmem, size = 0x800, scoped, tag = 'input window, operand 0, single buffered']
    #allocation3 [shape = 's32[1]{0}', space=sflag, size = 0x4, scoped, tag = 'scoped memory for tpu_custom_call.1']
    #allocation4 [shape = 's32[1]{0}', space=sflag, size = 0x4, scoped, tag = 'scoped memory for tpu_custom_call.1']
    #allocation5 [shape = 'u8[2048]{0}', space=vmem, size = 0x800, scoped, tag = 'input window, operand 1, single buffered']
    #allocation6 [shape = 's32[1]{0}', space=sflag, size = 0x4, scoped, tag = 'scoped memory for tpu_custom_call.1']
    #allocation7 [shape = 'u8[65536]{0}', space=vmem, size = 0x10000, scoped, tag = 'input window, operand 2, single buffered']
    #allocation8 [shape = 'u8[2048]{0}', space=vmem, size = 0x800, scoped, tag = 'input window, operand 3, single buffered']
    #allocation9 [shape = 's32[1]{0}', space=sflag, size = 0x4, scoped, tag = 'scoped memory for tpu_custom_call.1']
    #allocation10 [shape = 'u8[2048]{0}', space=vmem, size = 0x800, scoped, tag = 'output window, operand 0, single buffered']
    %9 = vsyncpa [#allocation3], 0
    %10 = vsyncpa [#allocation6], 0
    %11 = vsyncpa [#allocation9], 0
    %12 = vsyncpa [#allocation4], 0
    // Predicated region
    $region2: #{tpu_custom_call.1} parent=1 // pred_check
      _
    $region3: #{tpu_custom_call.1} parent=1 // pred_check_branch
      %14 = sbr.rel (0) target = $region5
    $region4: #{tpu_custom_call.1} parent=1 // pred_region
      %16 = vsyncadd [#allocation3], 0
      %s18 = sshll.u32 %s0, 4
      %s19 = int_to_ptr.hbm [resolvable:$true] %s18
      %s20 = sshll.u32 [#allocation2], 4
      %s21 = int_to_ptr.vmem [resolvable:$true] %s20
      %23 = dma.hbm_to_vmem [thread:$0]  %s19, 64, %s21, [#allocation3]
    $region5: #{tpu_custom_call.1} parent=1 // pred_fallthru
      _
    // Predicated region
    $region6: #{tpu_custom_call.1} parent=1 // pred_check
      _
    $region7: #{tpu_custom_call.1} parent=1 // pred_check_branch
      %25 = sbr.rel (0) target = $region9
    $region8: #{tpu_custom_call.1} parent=1 // pred_region
      %27 = vsyncadd [#allocation6], 0
      %s29 = sshll.u32 %s1, 4
      %s30 = int_to_ptr.hbm [resolvable:$true] %s29
      %s31 = sshll.u32 [#allocation5], 4
      %s32 = int_to_ptr.vmem [resolvable:$true] %s31
      %34 = dma.hbm_to_vmem [thread:$0]  %s30, 64, %s32, [#allocation6]
    $region9: #{tpu_custom_call.1} parent=1 // pred_fallthru
      _
    // Predicated region
    $region10: #{tpu_custom_call.1} parent=1 // pred_check
      _
    $region11: #{tpu_custom_call.1} parent=1 // pred_check_branch
      %36 = sbr.rel (0) target = $region13
    $region12: #{tpu_custom_call.1} parent=1 // pred_region
      %38 = vsyncadd [#allocation6], 0
      %s39 = sshll.u32 %s2, 4
      %s40 = int_to_ptr.hbm [resolvable:$true] %s39
      %s41 = sshll.u32 [#allocation7], 4
      %s42 = int_to_ptr.vmem [resolvable:$true] %s41
      %47 = dma.hbm_to_vmem [thread:$0]  %s40, 2048, %s42, [#allocation6], 128, 128, 8
    $region13: #{tpu_custom_call.1} parent=1 // pred_fallthru
      _
    // Predicated region
    $region14: #{tpu_custom_call.1} parent=1 // pred_check
      _
    $region15: #{tpu_custom_call.1} parent=1 // pred_check_branch
      %49 = sbr.rel (0) target = $region17
    $region16: #{tpu_custom_call.1} parent=1 // pred_region
      %51 = vsyncadd [#allocation9], 0
      %s53 = sshll.u32 %s3, 4
      %s54 = int_to_ptr.hbm [resolvable:$true] %s53
      %s55 = sshll.u32 [#allocation8], 4
      %s56 = int_to_ptr.vmem [resolvable:$true] %s55
      %58 = dma.hbm_to_vmem [thread:$0]  %s54, 64, %s56, [#allocation9]
    $region17: #{tpu_custom_call.1} parent=1 // pred_fallthru
      _
    // Predicated region
    $region18: #{tpu_custom_call.1} parent=1 // pred_check
      _
    $region19: #{tpu_custom_call.1} parent=1 // pred_check_branch
      %60 = sbr.rel (0) target = $region21
    $region20: #{tpu_custom_call.1} parent=1 // pred_region
      %62 = dma.done [#allocation3], 64
    $region21: #{tpu_custom_call.1} parent=1 // pred_fallthru
      _
    // Predicated region
    $region22: #{tpu_custom_call.1} parent=1 // pred_check
      _
    $region23: #{tpu_custom_call.1} parent=1 // pred_check_branch
      %64 = sbr.rel (0) target = $region25
    $region24: #{tpu_custom_call.1} parent=1 // pred_region
      %66 = dma.done [#allocation6], 64
    $region25: #{tpu_custom_call.1} parent=1 // pred_fallthru
      _
    // Predicated region
    $region26: #{tpu_custom_call.1} parent=1 // pred_check
      _
    $region27: #{tpu_custom_call.1} parent=1 // pred_check_branch
      %68 = sbr.rel (0) target = $region29
    $region28: #{tpu_custom_call.1} parent=1 // pred_region
      %70 = dma.done [#allocation6], 2048
    $region29: #{tpu_custom_call.1} parent=1 // pred_fallthru
      _
    // Predicated region
    $region30: #{tpu_custom_call.1} parent=1 // pred_check
      _
    $region31: #{tpu_custom_call.1} parent=1 // pred_check_branch
      %72 = sbr.rel (0) target = $region33
    $region32: #{tpu_custom_call.1} parent=1 // pred_region
      %74 = dma.done [#allocation9], 64
    $region33: #{tpu_custom_call.1} parent=1 // pred_fallthru
      _
    %v75 = vld [vmem:[#allocation2] sm:$0xf]
    %v76 = vld [vmem:[#allocation5] sm:$0xf]
    %v77 = vld [vmem:[#allocation7] sm:$0xff]
    %v78 = vld [vmem:[#allocation7 + $0x8] sm:$0xff]
    %v79 = vld [vmem:[#allocation7 + $0x10] sm:$0xff]
    %v80 = vld [vmem:[#allocation7 + $0x18] sm:$0xff]
    %v81 = vld [vmem:[#allocation7 + $0x20] sm:$0xff]
    %v82 = vld [vmem:[#allocation7 + $0x28] sm:$0xff]
    %vm83 = vcmask 261120
    %v85 = vsel %vm83, %v76, 0
    %87 = vmatpush.msra.mxu0 0.0
    %88 = vmatpush.msra.mxu0 0.0
    %89 = vmatpush.msra.mxu0 0.0
    %90 = vmatpush.msra.mxu0 0.0
    %91 = vmatpush.msra.mxu0 0.0
    %92 = vmatpush.msra.mxu0 0.0
    %93 = vmatpush.msra.mxu0 0.0
    %94 = vmatpush.msra.mxu0 0.0
    %95 = vmatpush.msra.mxu0 0.0
    %96 = vmatpush.msra.mxu0 0.0
    %97 = vmatpush.msra.mxu0 0.0
    %98 = vmatpush.msra.mxu0 0.0
    %99 = vmatpush.msra.mxu0 %v82
    %100 = vmatpush.msra.mxu0 %v81
    %101 = vmatpush.msra.mxu0 %v80
    %102 = vmatpush.msra.mxu0 %v79
    %103 = vmatmul.f32.gmra.mxu0 %v85
    %v104 = vpop.f32.mrf.mxu0
    %v105 = vadd.f32 0.0, %v104
    %106 = vdwg.mxu0
    %vm107 = vcmask 130048
    %v109 = vsel %vm107, %v75, 0
    %111 = vmatpush.msra.mxu0 0.0
    %112 = vmatpush.msra.mxu0 0.0
    %113 = vmatpush.msra.mxu0 0.0
    %114 = vmatpush.msra.mxu0 0.0
    %115 = vmatpush.msra.mxu0 0.0
    %116 = vmatpush.msra.mxu0 0.0
    %117 = vmatpush.msra.mxu0 0.0
    %118 = vmatpush.msra.mxu0 0.0
    %119 = vmatpush.msra.mxu0 0.0
    %120 = vmatpush.msra.mxu0 0.0
    %121 = vmatpush.msra.mxu0 0.0
    %122 = vmatpush.msra.mxu0 0.0
    %123 = vmatpush.msra.mxu0 0.0
    %124 = vmatpush.msra.mxu0 0.0
    %125 = vmatpush.msra.mxu0 %v78
    %126 = vmatpush.msra.mxu0 %v77
    %127 = vmatmul.f32.gmra.mxu0 %v109
    %v128 = vpop.f32.mrf.mxu0
    %v129 = vadd.f32 %v105, %v128
    %130 = vdwg.mxu0
    %v131 = vld [vmem:[#allocation8] sm:$0x1]
    %v132 = vperm.slane %v131, 0
    %v133 = vadd.f32 %v129, %v132
    %v134 = vxor.u32 %v133, 2147483648
    %v135 = vmul.f32 %v134, 1.442695
    %v136 = vpow.pop %v135
    %v137 = vadd.f32 %v136, 1.0
    %v138 = vrcp.pop %v137
    %v139 = vmul.f32 %v137, %v138
    %v140 = vsub.f32 1.0, %v139
    %v141 = vmul.f32 %v138, %v140
    %v142 = vadd.f32 %v138, %v141
    %vm143 = vweird.f32 %v137
    %vm144 = vweird.f32 %v138
    %vm145 = vmor %vm143, %vm144
    %v146 = vsel %vm145, %v138, %v142
    %v147 = vand.u32 2147483647, %v137
    %vm148 = vcmp.eq.f32.partialorder %v147, 8.507059e+37
    %v149 = vand.u32 %v137, 2147483648
    %v150 = vor.u32 1.1754944e-38, %v149
    %v151 = vsel %vm148, %v150, %v146
    %v152 = vmul.f32 1.0, %v151
    %154 = vrot.lane.b32.xlu0 %v133, 32
    %v155 = vpop.permute.xlu0 %154
    %v157 = vmul.f32 %v152, %v155
    %159 = vrot.lane.b32.xlu0 %v157, 64
    %v160 = vpop.permute.xlu0 %159
    %v162 = vadd.f32 %v133, %v160
    %v163 = vtanh.pop %v162
    %v164 = vsub.f32 1.0, %v152
    %166 = vrot.lane.b32.xlu0 %v163, 96
    %v167 = vpop.permute.xlu0 %166
    %v169 = vmul.f32 %v164, %v167
    %170 = vrot.lane.b32.xlu0 %v76, 32
    %v171 = vpop.permute.xlu0 %170
    %v173 = vmul.f32 %v152, %v171
    %v174 = vadd.f32 %v169, %v173
    %v175 = vld [vmem:[#allocation7 + $0x30] sm:$0xff]
    %v176 = vld [vmem:[#allocation7 + $0x38] sm:$0xff]
    %v177 = vld [vmem:[#allocation7 + $0x40] sm:$0xff]
    %v178 = vld [vmem:[#allocation7 + $0x48] sm:$0xff]
    %v179 = vld [vmem:[#allocation8 + $0x1] sm:$0x1]
    %v180 = vperm.slane %v179, 0
    %182 = vrot.lane.b32.xlu0 %v174, 96
    %v183 = vpop.permute.xlu0 %182
    %v184 = vsel %vm83, %v183, 0
    %186 = vmatpush.msra.mxu0 0.0
    %187 = vmatpush.msra.mxu0 0.0
    %188 = vmatpush.msra.mxu0 0.0
    %189 = vmatpush.msra.mxu0 0.0
    %190 = vmatpush.msra.mxu0 0.0
    %191 = vmatpush.msra.mxu0 0.0
    %192 = vmatpush.msra.mxu0 0.0
    %193 = vmatpush.msra.mxu0 0.0
    %194 = vmatpush.msra.mxu0 0.0
    %195 = vmatpush.msra.mxu0 0.0
    %196 = vmatpush.msra.mxu0 0.0
    %197 = vmatpush.msra.mxu0 0.0
    %198 = vmatpush.msra.mxu0 %v178
    %199 = vmatpush.msra.mxu0 %v177
    %200 = vmatpush.msra.mxu0 %v176
    %201 = vmatpush.msra.mxu0 %v175
    %202 = vmatmul.f32.gmra.mxu0 %v184
    %v203 = vpop.f32.mrf.mxu0
    %v204 = vadd.f32 %v180, %v203
    %205 = vdwg.mxu0
    %v206 = vtanh.pop %v204
    %v207 = vld [vmem:[#allocation7 + $0x50] sm:$0xff]
    %v208 = vld [vmem:[#allocation7 + $0x58] sm:$0xff]
    %v209 = vld [vmem:[#allocation7 + $0x60] sm:$0xff]
    %v210 = vld [vmem:[#allocation7 + $0x68] sm:$0xff]
    %v211 = vld [vmem:[#allocation8 + $0x2] sm:$0x1]
    %v212 = vperm.slane %v211, 0
    %v214 = vsel %vm83, %v206, 0
    %216 = vmatpush.msra.mxu0 0.0
    %217 = vmatpush.msra.mxu0 0.0
    %218 = vmatpush.msra.mxu0 0.0
    %219 = vmatpush.msra.mxu0 0.0
    %220 = vmatpush.msra.mxu0 0.0
    %221 = vmatpush.msra.mxu0 0.0
    %222 = vmatpush.msra.mxu0 0.0
    %223 = vmatpush.msra.mxu0 0.0
    %224 = vmatpush.msra.mxu0 0.0
    %225 = vmatpush.msra.mxu0 0.0
    %226 = vmatpush.msra.mxu0 0.0
    %227 = vmatpush.msra.mxu0 0.0
    %228 = vmatpush.msra.mxu0 %v210
    %229 = vmatpush.msra.mxu0 %v209
    %230 = vmatpush.msra.mxu0 %v208
    %231 = vmatpush.msra.mxu0 %v207
    %232 = vmatmul.f32.gmra.mxu0 %v214
    %v233 = vpop.f32.mrf.mxu0
    %v234 = vadd.f32 %v212, %v233
    %235 = vdwg.mxu0
    %v236 = vtanh.pop %v234
    %v237 = vld [vmem:[#allocation7 + $0x70] sm:$0xff]
    %v238 = vld [vmem:[#allocation7 + $0x78] sm:$0xff]
    %v239 = vld [vmem:[#allocation8 + $0x3] sm:$0x1]
    %v240 = vperm.slane %v239, 0
    %v242 = vsel %vm107, %v236, 0
    %244 = vmatpush.msra.mxu0 0.0
    %245 = vmatpush.msra.mxu0 0.0
    %246 = vmatpush.msra.mxu0 0.0
    %247 = vmatpush.msra.mxu0 0.0
    %248 = vmatpush.msra.mxu0 0.0
    %249 = vmatpush.msra.mxu0 0.0
    %250 = vmatpush.msra.mxu0 0.0
    %251 = vmatpush.msra.mxu0 0.0
    %252 = vmatpush.msra.mxu0 0.0
    %253 = vmatpush.msra.mxu0 0.0
    %254 = vmatpush.msra.mxu0 0.0
    %255 = vmatpush.msra.mxu0 0.0
    %256 = vmatpush.msra.mxu0 0.0
    %257 = vmatpush.msra.mxu0 0.0
    %258 = vmatpush.msra.mxu0 %v238
    %259 = vmatpush.msra.mxu0 %v237
    %260 = vmatmul.f32.gmra.mxu0 %v242
    %v261 = vpop.f32.mrf.mxu0
    %v262 = vadd.f32 %v240, %v261
    %263 = vdwg.mxu0
    %264 = vst [vmem:[#allocation10] sm:$0xf] 0.0
    %vm265 = vcmask 125952
    %266 = vst.msk [vmem:[#allocation10] sm:$0xf] %vm265, %v262
    %267 = vrot.lane.b32.xlu0 %v174, 112
    %v268 = vpop.permute.xlu0 %267
    %vm270 = vcmask 388224
    %271 = vst.msk [vmem:[#allocation10] sm:$0xf] %vm270, %v268
    // Predicated region
    $region34: #{tpu_custom_call.1} parent=1 // pred_check
      _
    $region35: #{tpu_custom_call.1} parent=1 // pred_check_branch
      %273 = sbr.rel (0) target = $region37
    $region36: #{tpu_custom_call.1} parent=1 // pred_region
      %275 = vsyncadd [#allocation4], 0
      %s277 = sshll.u32 [#allocation10], 4
      %s278 = int_to_ptr.vmem [resolvable:$true] %s277
      %s279 = sshll.u32 %s4, 4
      %s280 = int_to_ptr.hbm [resolvable:$true] %s279
      %282 = dma.vmem_to_hbm [thread:$0]  %s278, 64, %s280, [#allocation4]
    $region37: #{tpu_custom_call.1} parent=1 // pred_fallthru
      _
    // Predicated region
    $region38: #{tpu_custom_call.1} parent=1 // pred_check
      _
    $region39: #{tpu_custom_call.1} parent=1 // pred_check_branch
      %284 = sbr.rel (0) target = $region41
    $region40: #{tpu_custom_call.1} parent=1 // pred_region
      %286 = dma.done [#allocation4], 64
    $region41: #{tpu_custom_call.1} parent=1 // pred_fallthru
      _
    %287 = vsyncpa [#allocation3], 1
    %288 = vsyncpa [#allocation6], 1
    %289 = vsyncpa [#allocation9], 1
    %290 = vsyncpa [#allocation4], 1

</llo_original>
